<compile_context>
chip_gen: v5e
topology: v5e:2x2
jax: 0.10.0
libtpu: 0.0.40
codegen_flags: <defaults>
</compile_context>

<pallas_src>
import jax
import jax.numpy as jnp
from jax.experimental import pallas as pl
from jax.experimental.pallas import tpu as pltpu


_LANE = 128                        # keep last dim a multiple of the lane width
_MAX_TILE_BYTES = 4 * 1024 * 1024  # per-tile budget (double-buffered tiles stay
_MAX_TILE_ROWS = 512               # well inside the 32 MiB scoped-VMEM default)


# ---------------------------------------------------------------------------
# Phase 1: total = sum(x * x), streamed over row tiles.
# ---------------------------------------------------------------------------
def _sum_sq_kernel(x_ref, sum_ref, acc_ref):
    i = pl.program_id(0)

    @pl.when(i == 0)
    def _init():
        acc_ref[...] = jnp.zeros_like(acc_ref)

    x = x_ref[...]
    if x.dtype != jnp.float32:            # static (trace-time) dtype check
        x = x.astype(jnp.float32)
    acc_ref[...] += x * x                 # elementwise accumulate: VPU only

    @pl.when(i == pl.num_programs(0) - 1)
    def _finalize():
        # One cross-lane/cross-sublane reduction (XLU) for the whole array,
        # amortized over all grid steps.
        sum_ref[...] = jnp.sum(acc_ref[...], keepdims=True)


def _sum_of_squares(x, tile_r):
    rows, cols = x.shape
    return pl.pallas_call(
        _sum_sq_kernel,
        out_shape=jax.ShapeDtypeStruct((1, 1), jnp.float32),
        grid=(rows // tile_r,),
        in_specs=[pl.BlockSpec((tile_r, cols), lambda i: (i, 0))],
        out_specs=pl.BlockSpec((1, 1), lambda i: (0, 0)),
        scratch_shapes=[pltpu.VMEM((tile_r, cols), jnp.float32)],
        compiler_params=pltpu.CompilerParams(
            dimension_semantics=("arbitrary",)),   # reduction axis
    )(x)


# ---------------------------------------------------------------------------
# Phase 2: out = y * y + total, streamed over row tiles (lane-dense stores).
# ---------------------------------------------------------------------------
def _sq_plus_scalar_kernel(total_ref, y_ref, out_ref):
    y = y_ref[...]
    if y.dtype != jnp.float32:
        y = y.astype(jnp.float32)
    out_ref[...] = (y * y + total_ref[0, 0]).astype(out_ref.dtype)


def _square_plus_scalar(y, total, tile_r):
    rows, cols = y.shape
    return pl.pallas_call(
        _sq_plus_scalar_kernel,
        out_shape=jax.ShapeDtypeStruct((rows, cols), y.dtype),
        grid=(rows // tile_r,),
        in_specs=[
            pl.BlockSpec(memory_space=pltpu.MemorySpace.SMEM),  # (1,1) scalar
            pl.BlockSpec((tile_r, cols), lambda i: (i, 0)),
        ],
        out_specs=pl.BlockSpec((tile_r, cols), lambda i: (i, 0)),
        compiler_params=pltpu.CompilerParams(
            dimension_semantics=("parallel",)),    # v7x: 2 TCs split the rows
    )(total, y)


# ---------------------------------------------------------------------------
# Wrapper: shape normalization, padding, tile selection.
# ---------------------------------------------------------------------------
def _as_2d(a):
    if a.ndim == 0:
        return a.reshape(1, 1)
    if a.ndim == 1:
        return a.reshape(1, -1)
    return a.reshape(-1, a.shape[-1])


def _choose_tile_rows(n_rows, padded_cols, itemsize, max_rows):
    rows_by_bytes = (_MAX_TILE_BYTES // max(1, padded_cols * itemsize)) // 8 * 8
    rows = max(8, min(max_rows, rows_by_bytes))
    padded_rows = -(-n_rows // 8) * 8
    return min(rows, padded_rows)


def _pad_and_tile(a, max_rows):
    """Zero-pad to (multiple-of-tile_r rows, multiple-of-128 cols)."""
    r, c = a.shape
    cp = -(-c // _LANE) * _LANE
    tile_r = _choose_tile_rows(r, cp, a.dtype.itemsize, max_rows)
    rp = -(-r // tile_r) * tile_r
    if rp != r or cp != c:
        a = jnp.pad(a, ((0, rp - r), (0, cp - c)))
    return a, tile_r


def test_module_forward(x, y, *, max_tile_rows=_MAX_TILE_ROWS):
    """Pallas equivalent of TestModule.forward(): (x ** 2).sum() + y ** 2."""
    # NOTE: for tiny inputs (a few KiB) plain XLA fusion of
    # jnp.sum(x**2) + y**2 beats any kernel launch; this Pallas path targets
    # large arrays where HBM streaming dominates.
    x2 = _as_2d(jnp.asarray(x))
    y_arr = jnp.asarray(y)
    y2 = _as_2d(y_arr)
    ry, cy = y2.shape

    xp, tile_x = _pad_and_tile(x2, max_tile_rows)   # zero-pad: sum unchanged
    total = _sum_of_squares(xp, tile_x)             # (1, 1) float32

    yp, tile_y = _pad_and_tile(y2, max_tile_rows)
    outp = _square_plus_scalar(yp, total, tile_y)
    return outp[:ry, :cy].reshape(y_arr.shape)


if __name__ == "__main__":
    key = jax.random.PRNGKey(0)
    kx, ky = jax.random.split(key)

    # Small shapes; max_tile_rows=8 forces several grid steps so the streamed
    # accumulation / pipelined path is actually exercised.
    x = jax.random.normal(kx, (64, 256), dtype=jnp.float32)
    y = jax.random.normal(ky, (32, 256), dtype=jnp.float32)

    out = jax.block_until_ready(test_module_forward(x, y, max_tile_rows=8))
    ref = jnp.sum(x ** 2) + y ** 2
    assert out.shape == ref.shape and out.dtype == ref.dtype
    assert jnp.allclose(out, ref, atol=1e-4, rtol=1e-4)

    # Unaligned shapes: exercises the zero-pad path (rows not %8, cols not %128).
    xu = jax.random.normal(kx, (30, 200), dtype=jnp.float32)
    yu = jax.random.normal(ky, (20, 200), dtype=jnp.float32)
    out_u = jax.block_until_ready(test_module_forward(xu, yu, max_tile_rows=8))
    ref_u = jnp.sum(xu ** 2) + yu ** 2
    assert out_u.shape == ref_u.shape
    assert jnp.allclose(out_u, ref_u, atol=1e-4, rtol=1e-4)

    print("KERNEL_OK")
</pallas_src>

<mosaic_0001>
module attributes {stable_mosaic.version = 11 : i64} {
  func.func @_sum_sq_kernel(%arg0: i32, %arg1: memref<8x256xf32, #tpu.memory_space<vmem>>, %arg2: memref<1x1xf32, #tpu.memory_space<vmem>>, %arg3: memref<8x256xf32, #tpu.memory_space<vmem>>) attributes {dimension_semantics = [#tpu.dimension_semantics<arbitrary>], iteration_bounds = array<i64: 8>, scalar_prefetch = 0 : i64, scratch_operands = 1 : i64, tpu.core_type = #tpu.core_type<tc>, window_params = [{transform_indices = @transform_0, window_bounds = array<i64: 8, 256>}, {pipeline_mode = #tpu.pipeline_mode<synchronous>, transform_indices = @transform_1, window_bounds = array<i64: 1, 1>}]} {
    %c0_i32 = arith.constant 0 : i32
    %0 = arith.cmpi eq, %arg0, %c0_i32 : i32
    %1 = arith.extui %0 : i1 to i32
    %c0_i32_0 = arith.constant 0 : i32
    %2 = arith.cmpi ne, %1, %c0_i32_0 : i32
    scf.if %2 {
      %cst = arith.constant 0.000000e+00 : f32
      %11 = vector.broadcast %cst : f32 to vector<8x256xf32>
      %c0_7 = arith.constant 0 : index
      %c0_8 = arith.constant 0 : index
      %12 = vector.load %arg3[%c0_7, %c0_8] : memref<8x256xf32, #tpu.memory_space<vmem>>, vector<8x256xf32>
      tpu.vector_store %arg3[%c0_7, %c0_8], %11 {strides = array<i32>} : memref<8x256xf32, #tpu.memory_space<vmem>>, vector<8x256xf32>,
    } else {
    }
    %c0 = arith.constant 0 : index
    %c0_1 = arith.constant 0 : index
    %3 = vector.load %arg1[%c0, %c0_1] : memref<8x256xf32, #tpu.memory_space<vmem>>, vector<8x256xf32>
    %c0_2 = arith.constant 0 : index
    %c0_3 = arith.constant 0 : index
    %4 = vector.load %arg3[%c0_2, %c0_3] : memref<8x256xf32, #tpu.memory_space<vmem>>, vector<8x256xf32>
    %5 = arith.mulf %3, %3 : vector<8x256xf32>
    %6 = arith.addf %4, %5 : vector<8x256xf32>
    %c0_4 = arith.constant 0 : index
    %c0_5 = arith.constant 0 : index
    %7 = vector.load %arg3[%c0_4, %c0_5] : memref<8x256xf32, #tpu.memory_space<vmem>>, vector<8x256xf32>
    tpu.vector_store %arg3[%c0_4, %c0_5], %6 {strides = array<i32>} : memref<8x256xf32, #tpu.memory_space<vmem>>, vector<8x256xf32>,
    %c7_i32 = arith.constant 7 : i32
    %8 = arith.cmpi eq, %arg0, %c7_i32 : i32
    %9 = arith.extui %8 : i1 to i32
    %c0_i32_6 = arith.constant 0 : i32
    %10 = arith.cmpi ne, %9, %c0_i32_6 : i32
    scf.if %10 {
      %c0_7 = arith.constant 0 : index
      %c0_8 = arith.constant 0 : index
      %11 = vector.load %arg3[%c0_7, %c0_8] : memref<8x256xf32, #tpu.memory_space<vmem>>, vector<8x256xf32>
      %12 = vector.shape_cast %11 : vector<8x256xf32> to vector<1x8x256xf32>
      %cst = arith.constant dense<0.000000e+00> : vector<1xf32>
      %13 = vector.multi_reduction <add>, %12, %cst [1, 2] : vector<1x8x256xf32> to vector<1xf32>
      %14 = vector.shape_cast %13 : vector<1xf32> to vector<1x1x1xf32>
      %15 = vector.extract %14[0, 0, 0] : f32 from vector<1x1x1xf32>
      %16 = vector.broadcast %15 : f32 to vector<1x1xf32>
      %c0_9 = arith.constant 0 : index
      %c0_10 = arith.constant 0 : index
      %17 = vector.load %arg2[%c0_9, %c0_10] : memref<1x1xf32, #tpu.memory_space<vmem>>, vector<1x1xf32>
      tpu.vector_store %arg2[%c0_9, %c0_10], %16 {strides = array<i32>} : memref<1x1xf32, #tpu.memory_space<vmem>>, vector<1x1xf32>,
    } else {
    }
    return
  }
  func.func @transform_0(%arg0: i32) -> (i32, i32) {
    %c0_i32 = arith.constant 0 : i32
    %c0_i32_0 = arith.constant 0 : i32
    return %arg0, %c0_i32 : i32, i32
  }
  func.func @transform_1(%arg0: i32) -> (i32, i32) {
    %c0_i32 = arith.constant 0 : i32
    %c0_i32_0 = arith.constant 0 : i32
    %c0_i32_1 = arith.constant 0 : i32
    return %c0_i32, %c0_i32_0 : i32, i32
  }
}

</mosaic_0001>

<llo_original>
// kernel: tpu_custom_call.1
$region0: #{tpu_custom_call.1}
  #allocation0 [shape = 'u32[]', space=smem, size = 0x4, offset = 0x4, fixed_abs, tag = 'smem constant byte address 0x4 - core index']
  #allocation1 [shape = 'u32[72,128]{1,0:T(1,128)}', space=vmem, size = 0x9000, scoped, tag = 'internal scratch']
  #allocation2 [shape = 'f32[8,256]{1,0:T(8,128)}', space=vmem, size = 0x2000, scoped, tag = 'scratch operand']
  %s0 = inlined_call_operand.hbm [shape: f32[64,256], index: 0, kind: input, shape index: {}]
  %s1 = inlined_call_operand.hbm [shape: f32[1,1], index: 1, kind: output, shape index: {}]
  %s2 = sld [smem:[#allocation0]]
  $region49: #{tpu_custom_call.1} parent=0
    _
  %s4 = ssub.s32 1, %s2
  %s5 = scalar_select 0, %s4, %s2
  $region1: #{tpu_custom_call.1} parent=0
    #allocation3 [shape = 'u8[16384]{0}', space=vmem, size = 0x4000, scoped, tag = 'input window, operand 0']
    #allocation4 [shape = 's32[2]{0}', space=sflag, size = 0x8, scoped, tag = 'scoped memory for tpu_custom_call.1']
    #allocation5 [shape = 's32[2]{0}', space=sflag, size = 0x8, scoped, tag = 'scoped memory for tpu_custom_call.1']
    #allocation6 [shape = 'u8[512]{0}', space=vmem, size = 0x400, scoped, tag = 'output window, operand 0, single buffered']
    %6 = vsyncpa [#allocation4], 0
    %s7 = scalar_lea.sflag [#allocation4], 1
    %8 = vsyncpa %s7, 0
    %9 = vsyncpa [#allocation5], 0
    loop: start=0, step=1, limit=10
    $region2: #{tpu_custom_call.1} parent=1 // loop_pre_header
      _
    $region3: #{tpu_custom_call.1} parent=1 // loop_header
      %s11 = sphi 0, %s15
      %p12 = scmp.ge.s32.totalorder %s11, 10
      %s21 = sphi 0, %s23
      %s24 = sphi 0, %s21
      %s25 = sphi 0, %s24
      %s41 = sphi 0, %s25
      %s45 = sphi 0, %s45
      %s47 = sphi 0, %s45
      %s48 = sphi 0, %s47
      %s62 = sphi 0, %s48
    $region4: #{tpu_custom_call.1} parent=1 // loop_header_branch
      %14 = sbr.rel (%p12) target = $region8
    $region5: #{tpu_custom_call.1} parent=1 // loop_body
      %s16 = ssub.s32 %s11, 1
      %s17 = ssub.s32 %s11, 2
      %s18 = sadd.s32 %s11, 1
      %s19 = ssub.s32 %s11, %s18
      %p20 = scmp.eq.s32.totalorder %s19, 0
      %s22 = sadd.s32 %s21, 1
      %s23 = scalar_select %p20, %s21, %s22
      %p26 = pneg %p20
      %p27 = scmp.eq.s32.totalorder %s11, 7
      %p28 = por %p26, %p27
      %p29 = scmp.ne.s32.totalorder %s21, %s24
      %p30 = scmp.eq.s32.totalorder %s11, 0
      %p31 = por %p29, %p30
      %p32 = scmp.ne.s32.totalorder %s21, %s24
      %p33 = scmp.eq.s32.totalorder %s16, 7
      %p34 = por %p32, %p33
      %p35 = scmp.ne.s32.totalorder %s24, %s25
      %p36 = scmp.eq.s32.totalorder %s16, 0
      %p37 = por %p35, %p36
      %p38 = scmp.ne.s32.totalorder %s24, %s25
      %p39 = scmp.eq.s32.totalorder %s17, 7
      %p40 = por %p38, %p39
      %p42 = scmp.ne.s32.totalorder %s25, %s41
      %p43 = scmp.eq.s32.totalorder %s17, 0
      %p44 = por %p42, %p43
      %s46 = sadd.s32 %s45, 1
      %p49 = scmp.eq.s32.totalorder %s11, 7
      %p50 = scmp.ne.s32.totalorder %s45, %s47
      %p51 = scmp.eq.s32.totalorder %s11, 0
      %p52 = por %p50, %p51
      %p53 = scmp.ne.s32.totalorder %s45, %s47
      %p54 = scmp.eq.s32.totalorder %s16, 7
      %p55 = por %p53, %p54
      %p56 = scmp.ne.s32.totalorder %s47, %s48
      %p57 = scmp.eq.s32.totalorder %s16, 0
      %p58 = por %p56, %p57
      %p59 = scmp.ne.s32.totalorder %s47, %s48
      %p60 = scmp.eq.s32.totalorder %s17, 7
      %p61 = por %p59, %p60
      %p63 = scmp.ne.s32.totalorder %s48, %s62
      %p64 = scmp.eq.s32.totalorder %s17, 0
      %p65 = por %p63, %p64
      %p66 = scmp.le.s32.totalorder 1, %s11
      %p67 = scmp.lt.s32.totalorder %s11, 9
      %p68 = pnand %p66, %p67
      %p69 = pneg %p68
      // Predicated region
      $region9: #{tpu_custom_call.1} parent=5 // pred_check
        _
      $region10: #{tpu_custom_call.1} parent=5 // pred_check_branch
        %71 = sbr.rel (%p68) target = $region12
      $region11: #{tpu_custom_call.1} parent=5 // pred_region
        %s72 = ssub.s32 %s11, 1
      $region12: #{tpu_custom_call.1} parent=5 // pred_fallthru
        _
      %p73 = scmp.lt.s32.totalorder %s11, 8
      // Predicated region
      $region13: #{tpu_custom_call.1} parent=5 // pred_check
        %p74 = pneg %p73
      $region14: #{tpu_custom_call.1} parent=5 // pred_check_branch
        %76 = sbr.rel (%p74) target = $region16
      $region15: #{tpu_custom_call.1} parent=5 // pred_region
        // Predicated region
        $region17: #{tpu_custom_call.1} parent=15 // pred_check
          %p77 = pneg %p31
        $region18: #{tpu_custom_call.1} parent=15 // pred_check_branch
          %79 = sbr.rel (%p77) target = $region20
        $region19: #{tpu_custom_call.1} parent=15 // pred_region
          %s80 = sand.u32 %s21, 1
          %s81 = scalar_lea.sflag [#allocation4], %s80
          %s82 = sand.u32 %s21, 1
          %s83 = smul.addr %s82, 16
          %s84 = scalar_lea.vmem [#allocation3], %s83
          %86 = vsyncadd %s81, 0
          %s87 = smul.addr %s11, 2
          %s88 = smul.addr %s87, 8
          %s89 = scalar_lea.hbm %s0, %s88
          %s91 = sshll.u32 %s89, 4
          %s92 = int_to_ptr.hbm [resolvable:$true] %s91
          %s93 = sshll.u32 %s84, 4
          %s94 = int_to_ptr.vmem [resolvable:$true] %s93
          %96 = dma.hbm_to_vmem [thread:$0]  %s92, 256, %s94, %s81
        $region20: #{tpu_custom_call.1} parent=15 // pred_fallthru
          _
      $region16: #{tpu_custom_call.1} parent=5 // pred_fallthru
        _
      %p97 = scmp.le.s32.totalorder 1, %s11
      %p98 = scmp.lt.s32.totalorder %s11, 9
      %p99 = pnand %p97, %p98
      %p100 = pneg %p99
      // Predicated region
      $region21: #{tpu_custom_call.1} parent=5 // pred_check
        _
      $region22: #{tpu_custom_call.1} parent=5 // pred_check_branch
        %102 = sbr.rel (%p99) target = $region24
      $region23: #{tpu_custom_call.1} parent=5 // pred_region
        %s103 = ssub.s32 %s11, 1
        %s104 = sand.u32 %s24, 1
        %s105 = scalar_lea.sflag [#allocation4], %s104
        %s106 = sand.u32 %s24, 1
        %s107 = smul.addr %s106, 16
        %s108 = scalar_lea.vmem [#allocation3], %s107
        // Predicated region
        $region25: #{tpu_custom_call.1} parent=23 // pred_check
          %p109 = pneg %p37
        $region26: #{tpu_custom_call.1} parent=23 // pred_check_branch
          %111 = sbr.rel (%p109) target = $region28
        $region27: #{tpu_custom_call.1} parent=23 // pred_region
          %113 = dma.done %s105, 256
        $region28: #{tpu_custom_call.1} parent=23 // pred_fallthru
          _
        %s114 = sand.u32 %s24, 1
        %s115 = scalar_lea.sflag [#allocation4], %s114
        %s116 = sand.u32 %s24, 1
        %s117 = smul.addr %s116, 16
        %s118 = scalar_lea.vmem [#allocation3], %s117
        %p119 = pneg %p37
        %p120 = pneg %p34
        %p121 = pneg %p58
        %p122 = pneg %p55
        %p123 = scmp.eq.s32.totalorder %s16, 0
        // Predicated region
        $region29: #{tpu_custom_call.1} parent=23 // pred_check
          %p124 = pneg %p123
        $region30: #{tpu_custom_call.1} parent=23 // pred_check_branch
          %126 = sbr.rel (%p124) target = $region32
        $region31: #{tpu_custom_call.1} parent=23 // pred_region
          %127 = vst [vmem:[#allocation2] sm:$0xff] 0.0
          %128 = vst [vmem:[#allocation2 + $0x8] sm:$0xff] 0.0
        $region32: #{tpu_custom_call.1} parent=23 // pred_fallthru
          _
        %v129 = vld [vmem:[%s108] sm:$0xff]
        %v130 = vld [vmem:[%s108 + $0x8] sm:$0xff]
        %v131 = vld [vmem:[#allocation2] sm:$0xff]
        %v132 = vld [vmem:[#allocation2 + $0x8] sm:$0xff]
        %v133 = vmul.f32 %v129, %v129
        %v134 = vmul.f32 %v130, %v130
        %v135 = vadd.f32 %v131, %v133
        %v136 = vadd.f32 %v132, %v134
        %137 = vst [vmem:[#allocation2] sm:$0xff] %v135
        %138 = vst [vmem:[#allocation2 + $0x8] sm:$0xff] %v136
        %p139 = scmp.eq.s32.totalorder %s16, 7
        // Predicated region
        $region33: #{tpu_custom_call.1} parent=23 // pred_check
          %p140 = pneg %p139
        $region34: #{tpu_custom_call.1} parent=23 // pred_check_branch
          %142 = sbr.rel (%p140) target = $region36
        $region35: #{tpu_custom_call.1} parent=23 // pred_region
          %v143 = vld [vmem:[#allocation2] sm:$0xff]
          %v144 = vld [vmem:[#allocation2 + $0x8] sm:$0xff]
          %v145 = vadd.f32 %v143, %v144
          %146 = vadd.xlane.f32.xlu0 %v145
          %v147 = vpop.xlane.xlu0 %146
          %v148 = vrot.slane %v147, 4
          %v149 = vadd.f32 %v147, %v148
          %v150 = vrot.slane %v149, 2
          %v151 = vadd.f32 %v149, %v150
          %v152 = vrot.slane %v151, 1
          %v153 = vadd.f32 %v151, %v152
          %s154 = vtos %v153
          %v155 = vstv %s154
          %vm156 = vcmask 0
          %157 = vst.msk [vmem:[#allocation6] sm:$0x1] %vm156, %v155
        $region36: #{tpu_custom_call.1} parent=23 // pred_fallthru
          _
        // Predicated region
        $region37: #{tpu_custom_call.1} parent=23 // pred_check
          %p158 = pneg %p55
        $region38: #{tpu_custom_call.1} parent=23 // pred_check_branch
          %160 = sbr.rel (%p158) target = $region40
        $region39: #{tpu_custom_call.1} parent=23 // pred_region
          %162 = vsyncadd [#allocation5], 0
          %s164 = sshll.u32 [#allocation6], 4
          %s165 = int_to_ptr.vmem [resolvable:$true] %s164
          %s166 = sshll.u32 %s1, 4
          %s167 = int_to_ptr.hbm [resolvable:$true] %s166
          %169 = dma.vmem_to_hbm [thread:$0]  %s165, 16, %s167, [#allocation5]
        $region40: #{tpu_custom_call.1} parent=23 // pred_fallthru
          _
        // Predicated region
        $region41: #{tpu_custom_call.1} parent=23 // pred_check
          %p170 = pneg %p55
        $region42: #{tpu_custom_call.1} parent=23 // pred_check_branch
          %172 = sbr.rel (%p170) target = $region44
        $region43: #{tpu_custom_call.1} parent=23 // pred_region
          %174 = dma.done [#allocation5], 16
        $region44: #{tpu_custom_call.1} parent=23 // pred_fallthru
          _
      $region24: #{tpu_custom_call.1} parent=5 // pred_fallthru
        _
      %p175 = scmp.le.s32.totalorder 2, %s11
      // Predicated region
      $region45: #{tpu_custom_call.1} parent=5 // pred_check
        %p176 = pneg %p175
      $region46: #{tpu_custom_call.1} parent=5 // pred_check_branch
        %178 = sbr.rel (%p176) target = $region48
      $region47: #{tpu_custom_call.1} parent=5 // pred_region
        %s179 = ssub.s32 %s11, 2
      $region48: #{tpu_custom_call.1} parent=5 // pred_fallthru
        _
    $region6: #{tpu_custom_call.1} parent=1 // loop_footer
      %s15 = sadd.s32 1, %s11
    $region7: #{tpu_custom_call.1} parent=1 // loop_footer_branch
      %10 = sbr.rel target = $region3
    $region8: #{tpu_custom_call.1} parent=1 // loop_exit
      _
    %180 = vsyncpa [#allocation4], 1
    %s181 = scalar_lea.sflag [#allocation4], 1
    %182 = vsyncpa %s181, 1
    %183 = vsyncpa [#allocation5], 1
    %s184 = scalar_lea.sflag [#allocation5], 1
    %185 = vsyncpa %s184, 1

</llo_original>
